<compile_context>
chip_gen: v6e
topology: v6e:2x2x1
jax: 0.10.0
libtpu: 0.0.40
codegen_flags: <defaults>
</compile_context>

<pallas_src>
import functools

import jax
import jax.numpy as jnp
from jax.experimental import pallas as pl
from jax.experimental.pallas import tpu as pltpu

# ---- module hyper-parameters (from the PyTorch source) ----
NEMB = 42                  # embedding dim
NHEAD = 1                  # number of heads
HEADSIZ = NEMB // NHEAD    # 42
BLOCKSIZ = 128             # max sequence length (tril buffer size)
DROPOUT = 0.0              # identity at p=0.0


def _tpu_generation():
    """Best-effort TPU generation from device_kind; 0 if unknown."""
    try:
        kind = jax.devices()[0].device_kind.lower()
    except Exception:
        return 0
    if "v7" in kind or "tpu7" in kind or "tpu 7" in kind:
        return 7
    for g in (6, 5, 4, 3, 2):
        if f"v{g}" in kind:
            return g
    return 0


def _pick_bb(B, max_bb=32, want_even_grid=False):
    """Largest divisor of B <= max_bb; on dual-TC chips prefer an even grid."""
    divisors = [d for d in range(1, min(B, max_bb) + 1) if B % d == 0]
    if want_even_grid:
        even = [d for d in divisors if (B // d) % 2 == 0]
        if even:
            return max(even)
    return max(divisors)


def _mha_kernel(x_ref, wqkv_ref, wp_ref, bp_ref, mask_ref, o_ref, *, exp_dtype):
    """BB batch elements of single-head causal self-attention + output proj.

    x_ref    : (BB, T, C_in)           input tokens (f32, C_in = 42 or 128)
    wqkv_ref : (C_in, 3*HEADSIZ)       fused K|Q|V weight, (in,out), bf16;
                                       q rows pre-scaled by headsiz**-0.5
    wp_ref   : (HEADSIZ, C_out)        output projection weight, (in,out), bf16
    bp_ref   : (1, C_out)              output projection bias, f32
    mask_ref : (T, T)                  additive causal mask (0 / -1e30), f32
    o_ref    : (BB, T, C_out)          output
    """
    x = x_ref[...].astype(jnp.bfloat16)                        # (BB, T, C_in)

    # fused q/k/v projection: one bf16 MXU matmul, f32 accumulate
    qkv = jnp.einsum("btc,ch->bth", x, wqkv_ref[...],
                     preferred_element_type=jnp.float32)        # (BB, T, 3H)
    k = qkv[:, :, 0 * HEADSIZ:1 * HEADSIZ]
    q = qkv[:, :, 1 * HEADSIZ:2 * HEADSIZ]                      # already scaled
    v = qkv[:, :, 2 * HEADSIZ:3 * HEADSIZ]

    # attention scores: contract last dims (no k transpose materialized);
    # the 1/sqrt(headsiz) scale is folded into the q projection weight.
    s = jnp.einsum("bqh,bkh->bqk",
                   q.astype(jnp.bfloat16), k.astype(jnp.bfloat16),
                   preferred_element_type=jnp.float32)          # (BB, T, T)

    # hoisted additive causal mask, broadcast over the BB dim
    s = s + mask_ref[...]

    # numerically-stable softmax; exp in bf16 on bf16-EUP chips, denom in f32
    m = jnp.max(s, axis=-1, keepdims=True)
    e = jnp.exp((s - m).astype(exp_dtype))                      # (BB, T, T)
    denom = jnp.sum(e, axis=-1, keepdims=True, dtype=jnp.float32)
    # dropout(p=0.0) is identity

    # un-normalized attention @ v, then post-normalize the (BB,T,H) result
    head = jnp.einsum("bqk,bkh->bqh",
                      e.astype(jnp.bfloat16), v.astype(jnp.bfloat16),
                      preferred_element_type=jnp.float32)       # (BB, T, H)
    head = head * pl.reciprocal(denom, approx=True)

    # output projection (weight pre-transposed to (in,out)) + bias, f32 acc
    out = jnp.einsum("bth,hc->btc",
                     head.astype(jnp.bfloat16), wp_ref[...],
                     preferred_element_type=jnp.float32)        # (BB, T, C_out)
    out = out + bp_ref[...]
    # dropout(p=0.0) is identity

    o_ref[...] = out.astype(o_ref.dtype)


def multi_head_attention(x, wk, wq, wv, wp, bp):
    """x: (B, T, NEMB) float32 -> (B, T, NEMB) float32.

    wk/wq/wv: (HEADSIZ, NEMB)  PyTorch Linear layout (out, in), no bias
    wp: (NEMB, HEADSIZ*NHEAD)  PyTorch Linear layout (out, in)
    bp: (1, NEMB)
    """
    B, T, C = x.shape
    assert C == NEMB
    assert T <= BLOCKSIZ
    scale = HEADSIZ ** (-0.5)

    gen = _tpu_generation()
    two_tc = gen >= 7                              # v7x: 2 TensorCores / chip
    exp_dtype = jnp.bfloat16 if gen >= 6 else jnp.float32   # bf16 EUP on v6e/v7x
    pad_lanes = (gen >= 7) and (C < 128)           # lane-dense output on v7x

    BB = _pick_bb(B, max_bb=32, want_even_grid=two_tc)
    grid = (B // BB,)

    # --- host-side weight prep (done once, outside the grid loop) ---
    # fused K|Q|V projection weight, (in, out), bf16; scale folded into q rows
    w_qkv = jnp.concatenate([wk, wq * scale, wv], axis=0).T.astype(jnp.bfloat16)
    wp_t = wp.T.astype(jnp.bfloat16)                                   # (H, C)
    bp_f32 = bp.astype(jnp.float32)                                    # (1, C)

    x_in = x
    c_in = c_out = C
    if pad_lanes:
        CP = 128
        x_in = jnp.pad(x, ((0, 0), (0, 0), (0, CP - C)))               # (B,T,128)
        w_qkv = jnp.pad(w_qkv, ((0, CP - C), (0, 0)))                  # (128,3H)
        wp_t = jnp.pad(wp_t, ((0, 0), (0, CP - C)))                    # (H,128)
        bp_f32 = jnp.pad(bp_f32, ((0, 0), (0, CP - C)))                # (1,128)
        c_in = c_out = CP

    # additive causal mask (0 where allowed, -1e30 where masked), built once
    tri = jnp.tril(jnp.ones((T, T), dtype=bool))
    mask = jnp.where(tri, jnp.float32(0.0), jnp.float32(-1e30))

    kernel = functools.partial(_mha_kernel, exp_dtype=exp_dtype)

    cost = pl.CostEstimate(
        flops=int(B * (2 * T * c_in * 3 * HEADSIZ      # fused qkv projection
                       + 2 * 2 * T * T * HEADSIZ       # scores + attn@v
                       + 2 * T * HEADSIZ * c_out)),    # output projection
        transcendentals=int(B * T * T),                # exp in softmax
        bytes_accessed=int(B * T * c_in * 4 + B * T * c_out * 4   # x in + out
                           + w_qkv.size * 2 + wp_t.size * 2
                           + bp_f32.size * 4 + T * T * 4),
    )

    grid_spec = pltpu.PrefetchScalarGridSpec(
        num_scalar_prefetch=0,
        grid=grid,
        in_specs=[
            # BB batch elements per grid step
            pl.BlockSpec((BB, T, c_in), lambda b: (b, 0, 0)),
            # weights / bias / mask: full arrays, resident every step
            pl.BlockSpec((c_in, 3 * HEADSIZ), lambda b: (0, 0)),
            pl.BlockSpec((HEADSIZ, c_out), lambda b: (0, 0)),
            pl.BlockSpec((1, c_out), lambda b: (0, 0)),
            pl.BlockSpec((T, T), lambda b: (0, 0)),
        ],
        out_specs=pl.BlockSpec((BB, T, c_out), lambda b: (b, 0, 0)),
    )

    out = pl.pallas_call(
        kernel,
        out_shape=jax.ShapeDtypeStruct((B, T, c_out), x.dtype),
        grid_spec=grid_spec,
        compiler_params=pltpu.CompilerParams(
            dimension_semantics=("parallel",)),
        cost_estimate=cost,
    )(x_in, w_qkv, wp_t, bp_f32, mask)

    if pad_lanes:
        out = out[:, :, :C]
    return out


def reference_mha(x, wk, wq, wv, wp, bp):
    """Pure-JAX f32 reference matching the PyTorch forward exactly."""
    B, T, C = x.shape
    k = x @ wk.T
    q = x @ wq.T
    v = x @ wv.T
    w = (q @ jnp.swapaxes(k, -2, -1)) * (HEADSIZ ** (-0.5))
    mask = jnp.tril(jnp.ones((T, T), dtype=bool))
    w = jnp.where(mask, w, -jnp.inf)
    w = jax.nn.softmax(w, axis=-1)
    out = w @ v
    return out @ wp.T + bp[0]


if __name__ == "__main__":
    # small deterministic example: B=4, T=16, C=nemb=42
    B, T = 4, 16
    key = jax.random.PRNGKey(0)
    kx, kk, kq, kv, kp, kb = jax.random.split(key, 6)

    x = jax.random.normal(kx, (B, T, NEMB), dtype=jnp.float32)

    # deterministic parameter init (uniform ~ PyTorch Linear default scale)
    lim_h = 1.0 / (NEMB ** 0.5)
    lim_p = 1.0 / ((HEADSIZ * NHEAD) ** 0.5)
    wk = jax.random.uniform(kk, (HEADSIZ, NEMB), jnp.float32, -lim_h, lim_h)
    wq = jax.random.uniform(kq, (HEADSIZ, NEMB), jnp.float32, -lim_h, lim_h)
    wv = jax.random.uniform(kv, (HEADSIZ, NEMB), jnp.float32, -lim_h, lim_h)
    wp = jax.random.uniform(kp, (NEMB, HEADSIZ * NHEAD), jnp.float32, -lim_p, lim_p)
    bp = jax.random.uniform(kb, (1, NEMB), jnp.float32, -lim_p, lim_p)

    out = multi_head_attention(x, wk, wq, wv, wp, bp)
    out = jax.block_until_ready(out)

    ref = reference_mha(x, wk, wq, wv, wp, bp)
    assert out.shape == (B, T, NEMB)
    # bf16 MXU inputs (f32 accumulate) + approx reciprocal (+ bf16 exp on
    # v6e/v7x) -> loosened tolerance
    assert jnp.allclose(out, ref, atol=2e-2, rtol=2e-2), "mismatch vs reference"

    print("KERNEL_OK")
</pallas_src>

<mosaic_0001>
module attributes {stable_mosaic.version = 11 : i64} {
  func.func @_mha_kernel(%arg0: i32, %arg1: memref<4x16x42xf32, #tpu.memory_space<vmem>>, %arg2: memref<42x126xbf16, #tpu.memory_space<vmem>>, %arg3: memref<42x42xbf16, #tpu.memory_space<vmem>>, %arg4: memref<1x42xf32, #tpu.memory_space<vmem>>, %arg5: memref<16x16xf32, #tpu.memory_space<vmem>>, %arg6: memref<4x16x42xf32, #tpu.memory_space<vmem>>) attributes {dimension_semantics = [#tpu.dimension_semantics<parallel>], iteration_bounds = array<i64: 1>, scalar_prefetch = 0 : i64, scratch_operands = 0 : i64, tpu.core_type = #tpu.core_type<tc>, window_params = [{transform_indices = @transform_0, window_bounds = array<i64: 4, 16, 42>}, {pipeline_mode = #tpu.pipeline_mode<synchronous>, transform_indices = @transform_1, window_bounds = array<i64: 42, 126>}, {pipeline_mode = #tpu.pipeline_mode<synchronous>, transform_indices = @transform_2, window_bounds = array<i64: 42, 42>}, {pipeline_mode = #tpu.pipeline_mode<synchronous>, transform_indices = @transform_3, window_bounds = array<i64: 1, 42>}, {pipeline_mode = #tpu.pipeline_mode<synchronous>, transform_indices = @transform_4, window_bounds = array<i64: 16, 16>}, {transform_indices = @transform_5, window_bounds = array<i64: 4, 16, 42>}]} {
    %c0 = arith.constant 0 : index
    %c0_0 = arith.constant 0 : index
    %c0_1 = arith.constant 0 : index
    %0 = vector.load %arg1[%c0, %c0_0, %c0_1] : memref<4x16x42xf32, #tpu.memory_space<vmem>>, vector<4x16x42xf32>
    %1 = arith.truncf %0 : vector<4x16x42xf32> to vector<4x16x42xbf16>
    %c0_2 = arith.constant 0 : index
    %c0_3 = arith.constant 0 : index
    %2 = vector.load %arg2[%c0_2, %c0_3] : memref<42x126xbf16, #tpu.memory_space<vmem>>, vector<42x126xbf16>
    "tpu.trace_start"() <{level = 10 : i32, message = "btc,ch->bth"}> : () -> ()
    %cst = arith.constant dense<0.000000e+00> : vector<4x16x126xf32>
    %3 = tpu.matmul %1, %2, %cst {dimension_numbers = #tpu.dot_dimension_numbers<[2], [0], [0, 1], [1], [0, 0, 0, 1, 1, 1], [], []>} : vector<4x16x42xbf16>, vector<42x126xbf16>, vector<4x16x126xf32> -> vector<4x16x126xf32>
    "tpu.trace_stop"() : () -> ()
    %4 = vector.extract_strided_slice %3 {offsets = [0, 0, 0], sizes = [4, 16, 42], strides = [1, 1, 1]} : vector<4x16x126xf32> to vector<4x16x42xf32>
    %5 = vector.extract_strided_slice %3 {offsets = [0, 0, 42], sizes = [4, 16, 42], strides = [1, 1, 1]} : vector<4x16x126xf32> to vector<4x16x42xf32>
    %6 = vector.extract_strided_slice %3 {offsets = [0, 0, 84], sizes = [4, 16, 42], strides = [1, 1, 1]} : vector<4x16x126xf32> to vector<4x16x42xf32>
    %7 = arith.truncf %5 : vector<4x16x42xf32> to vector<4x16x42xbf16>
    %8 = arith.truncf %4 : vector<4x16x42xf32> to vector<4x16x42xbf16>
    "tpu.trace_start"() <{level = 10 : i32, message = "bqh,bkh->bqk"}> : () -> ()
    %cst_4 = arith.constant dense<0.000000e+00> : vector<4x16x16xf32>
    %9 = tpu.matmul %7, %8, %cst_4 {dimension_numbers = #tpu.dot_dimension_numbers<[2], [2], [1], [1], [0, 0, 0, 1, 1, 1], [0], [0]>} : vector<4x16x42xbf16>, vector<4x16x42xbf16>, vector<4x16x16xf32> -> vector<4x16x16xf32>
    "tpu.trace_stop"() : () -> ()
    %c0_5 = arith.constant 0 : index
    %c0_6 = arith.constant 0 : index
    %10 = vector.load %arg5[%c0_5, %c0_6] : memref<16x16xf32, #tpu.memory_space<vmem>>, vector<16x16xf32>
    %11 = vector.shape_cast %10 : vector<16x16xf32> to vector<1x16x16xf32>
    %12 = vector.broadcast %11 : vector<1x16x16xf32> to vector<4x16x16xf32>
    %13 = arith.addf %9, %12 : vector<4x16x16xf32>
    %cst_7 = arith.constant dense<0xFF800000> : vector<4x16xf32>
    %14 = vector.multi_reduction <maximumf>, %13, %cst_7 [2] : vector<4x16x16xf32> to vector<4x16xf32>
    %15 = vector.shape_cast %14 : vector<4x16xf32> to vector<4x16x1xf32>
    %16 = vector.broadcast %15 : vector<4x16x1xf32> to vector<4x16x16xf32>
    %17 = arith.subf %13, %16 : vector<4x16x16xf32>
    %18 = math.exp %17 : vector<4x16x16xf32>
    %cst_8 = arith.constant dense<0.000000e+00> : vector<4x16xf32>
    %19 = vector.multi_reduction <add>, %18, %cst_8 [2] : vector<4x16x16xf32> to vector<4x16xf32>
    %20 = vector.shape_cast %19 : vector<4x16xf32> to vector<4x16x1xf32>
    %21 = arith.truncf %18 : vector<4x16x16xf32> to vector<4x16x16xbf16>
    %22 = arith.truncf %6 : vector<4x16x42xf32> to vector<4x16x42xbf16>
    "tpu.trace_start"() <{level = 10 : i32, message = "bqk,bkh->bqh"}> : () -> ()
    %cst_9 = arith.constant dense<0.000000e+00> : vector<4x16x42xf32>
    %23 = tpu.matmul %21, %22, %cst_9 {dimension_numbers = #tpu.dot_dimension_numbers<[2], [1], [1], [2], [0, 0, 0, 1, 1, 2], [0], [0]>} : vector<4x16x16xbf16>, vector<4x16x42xbf16>, vector<4x16x42xf32> -> vector<4x16x42xf32>
    "tpu.trace_stop"() : () -> ()
    %24 = tpu.reciprocal %20 {approx = true} : vector<4x16x1xf32> -> vector<4x16x1xf32>
    %25 = vector.broadcast %24 : vector<4x16x1xf32> to vector<4x16x42xf32>
    %26 = arith.mulf %23, %25 : vector<4x16x42xf32>
    %27 = arith.truncf %26 : vector<4x16x42xf32> to vector<4x16x42xbf16>
    %c0_10 = arith.constant 0 : index
    %c0_11 = arith.constant 0 : index
    %28 = vector.load %arg3[%c0_10, %c0_11] : memref<42x42xbf16, #tpu.memory_space<vmem>>, vector<42x42xbf16>
    "tpu.trace_start"() <{level = 10 : i32, message = "bth,hc->btc"}> : () -> ()
    %cst_12 = arith.constant dense<0.000000e+00> : vector<4x16x42xf32>
    %29 = tpu.matmul %27, %28, %cst_12 {dimension_numbers = #tpu.dot_dimension_numbers<[2], [0], [0, 1], [1], [0, 0, 0, 1, 1, 1], [], []>} : vector<4x16x42xbf16>, vector<42x42xbf16>, vector<4x16x42xf32> -> vector<4x16x42xf32>
    "tpu.trace_stop"() : () -> ()
    %c0_13 = arith.constant 0 : index
    %c0_14 = arith.constant 0 : index
    %30 = vector.load %arg4[%c0_13, %c0_14] : memref<1x42xf32, #tpu.memory_space<vmem>>, vector<1x42xf32>
    %31 = vector.shape_cast %30 : vector<1x42xf32> to vector<1x1x42xf32>
    %32 = vector.broadcast %31 : vector<1x1x42xf32> to vector<4x16x42xf32>
    %33 = arith.addf %29, %32 : vector<4x16x42xf32>
    %c0_15 = arith.constant 0 : index
    %c0_16 = arith.constant 0 : index
    %c0_17 = arith.constant 0 : index
    %34 = vector.load %arg6[%c0_15, %c0_16, %c0_17] : memref<4x16x42xf32, #tpu.memory_space<vmem>>, vector<4x16x42xf32>
    tpu.vector_store %arg6[%c0_15, %c0_16, %c0_17], %33 {strides = array<i32>} : memref<4x16x42xf32, #tpu.memory_space<vmem>>, vector<4x16x42xf32>,
    return
  }
  func.func @transform_0(%arg0: i32) -> (i32, i32, i32) {
    %c0_i32 = arith.constant 0 : i32
    %c0_i32_0 = arith.constant 0 : i32
    %c0_i32_1 = arith.constant 0 : i32
    return %arg0, %c0_i32, %c0_i32_0 : i32, i32, i32
  }
  func.func @transform_1(%arg0: i32) -> (i32, i32) {
    %c0_i32 = arith.constant 0 : i32
    %c0_i32_0 = arith.constant 0 : i32
    %c0_i32_1 = arith.constant 0 : i32
    return %c0_i32, %c0_i32_0 : i32, i32
  }
  func.func @transform_2(%arg0: i32) -> (i32, i32) {
    %c0_i32 = arith.constant 0 : i32
    %c0_i32_0 = arith.constant 0 : i32
    %c0_i32_1 = arith.constant 0 : i32
    return %c0_i32, %c0_i32_0 : i32, i32
  }
  func.func @transform_3(%arg0: i32) -> (i32, i32) {
    %c0_i32 = arith.constant 0 : i32
    %c0_i32_0 = arith.constant 0 : i32
    %c0_i32_1 = arith.constant 0 : i32
    return %c0_i32, %c0_i32_0 : i32, i32
  }
  func.func @transform_4(%arg0: i32) -> (i32, i32) {
    %c0_i32 = arith.constant 0 : i32
    %c0_i32_0 = arith.constant 0 : i32
    %c0_i32_1 = arith.constant 0 : i32
    return %c0_i32, %c0_i32_0 : i32, i32
  }
  func.func @transform_5(%arg0: i32) -> (i32, i32, i32) {
    %c0_i32 = arith.constant 0 : i32
    %c0_i32_0 = arith.constant 0 : i32
    %c0_i32_1 = arith.constant 0 : i32
    return %arg0, %c0_i32, %c0_i32_0 : i32, i32, i32
  }
}

</mosaic_0001>

<llo_original>
// kernel: tpu_custom_call.1
$region0: #{tpu_custom_call.1}
  #allocation0 [shape = 'u32[]', space=smem, size = 0x4, offset = 0x4, fixed_abs, tag = 'smem constant byte address 0x4 - core index']
  #allocation1 [shape = 'u32[144,128]{1,0:T(1,128)}', space=vmem, size = 0x12000, scoped, tag = 'internal scratch']
  %s0 = inlined_call_operand.hbm [shape: f32[4,16,42], index: 0, kind: input, shape index: {}]
  %s1 = inlined_call_operand.hbm [shape: bf16[42,126], index: 1, kind: input, shape index: {}]
  %s2 = inlined_call_operand.hbm [shape: bf16[42,42], index: 2, kind: input, shape index: {}]
  %s3 = inlined_call_operand.vmem [shape: f32[1,42], index: 3, kind: input, shape index: {}]
  %s4 = inlined_call_operand.hbm [shape: f32[16,16], index: 4, kind: input, shape index: {}]
  %s5 = inlined_call_operand.hbm [shape: f32[4,16,42], index: 5, kind: output, shape index: {}]
  %s6 = sld [smem:[#allocation0]]
  $region46: #{tpu_custom_call.1} parent=0
    _
  %s8 = ssub.s32 1, %s6
  %s9 = scalar_select 0, %s8, %s6
  $region1: #{tpu_custom_call.1} parent=0
    #allocation2 [shape = 'u8[32768]{0}', space=vmem, size = 0x8000, scoped, tag = 'input window, operand 0, single buffered']
    #allocation3 [shape = 's32[1]{0}', space=sflag, size = 0x4, scoped, tag = 'scoped memory for tpu_custom_call.1']
    #allocation4 [shape = 's32[1]{0}', space=sflag, size = 0x4, scoped, tag = 'scoped memory for tpu_custom_call.1']
    #allocation5 [shape = 'u8[12288]{0}', space=vmem, size = 0x3000, scoped, tag = 'input window, operand 1, single buffered']
    #allocation6 [shape = 's32[1]{0}', space=sflag, size = 0x4, scoped, tag = 'scoped memory for tpu_custom_call.1']
    #allocation7 [shape = 'u8[12288]{0}', space=vmem, size = 0x3000, scoped, tag = 'input window, operand 2, single buffered']
    #allocation8 [shape = 'u8[8192]{0}', space=vmem, size = 0x2000, scoped, tag = 'input window, operand 4, single buffered']
    #allocation9 [shape = 's32[1]{0}', space=sflag, size = 0x4, scoped, tag = 'scoped memory for tpu_custom_call.1']
    #allocation10 [shape = 'u8[32768]{0}', space=vmem, size = 0x8000, scoped, tag = 'output window, operand 0, single buffered']
    %10 = vsyncpa [#allocation3], 0
    %11 = vsyncpa [#allocation6], 0
    %12 = vsyncpa [#allocation9], 0
    %13 = vsyncpa [#allocation4], 0
    // Predicated region
    $region2: #{tpu_custom_call.1} parent=1 // pred_check
      _
    $region3: #{tpu_custom_call.1} parent=1 // pred_check_branch
      %15 = sbr.rel (0) target = $region5
    $region4: #{tpu_custom_call.1} parent=1 // pred_region
      %s17 = ssub.s32 1024, 1024
      %18 = vsyncadd [#allocation3], %s17
      %s19 = sshll.u32 [#allocation2], 4
      %s20 = int_to_ptr.vmem [resolvable:$true] %s19
      %25 = dma.hbm_to_vmem [thread:$0]  %s0, 1024, %s20, [#allocation3], 128, 128, 8
    $region5: #{tpu_custom_call.1} parent=1 // pred_fallthru
      _
    // Predicated region
    $region6: #{tpu_custom_call.1} parent=1 // pred_check
      _
    $region7: #{tpu_custom_call.1} parent=1 // pred_check_branch
      %27 = sbr.rel (0) target = $region9
    $region8: #{tpu_custom_call.1} parent=1 // pred_region
      %s29 = ssub.s32 384, 384
      %30 = vsyncadd [#allocation6], %s29
      %s31 = sshll.u32 [#allocation5], 4
      %s32 = int_to_ptr.vmem [resolvable:$true] %s31
      %37 = dma.hbm_to_vmem [thread:$0]  %s1, 384, %s32, [#allocation6], 64, 64, 4
    $region9: #{tpu_custom_call.1} parent=1 // pred_fallthru
      _
    // Predicated region
    $region10: #{tpu_custom_call.1} parent=1 // pred_check
      _
    $region11: #{tpu_custom_call.1} parent=1 // pred_check_branch
      %39 = sbr.rel (0) target = $region13
    $region12: #{tpu_custom_call.1} parent=1 // pred_region
      %s41 = ssub.s32 384, 384
      %42 = vsyncadd [#allocation6], %s41
      %s43 = sshll.u32 [#allocation7], 4
      %s44 = int_to_ptr.vmem [resolvable:$true] %s43
      %49 = dma.hbm_to_vmem [thread:$0]  %s2, 384, %s44, [#allocation6], 64, 64, 4
    $region13: #{tpu_custom_call.1} parent=1 // pred_fallthru
      _
    // Predicated region
    $region14: #{tpu_custom_call.1} parent=1 // pred_check
      _
    $region15: #{tpu_custom_call.1} parent=1 // pred_check_branch
      %51 = sbr.rel (0) target = $region17
    $region16: #{tpu_custom_call.1} parent=1 // pred_region
      _
    $region17: #{tpu_custom_call.1} parent=1 // pred_fallthru
      _
    // Predicated region
    $region18: #{tpu_custom_call.1} parent=1 // pred_check
      _
    $region19: #{tpu_custom_call.1} parent=1 // pred_check_branch
      %53 = sbr.rel (0) target = $region21
    $region20: #{tpu_custom_call.1} parent=1 // pred_region
      %s55 = ssub.s32 256, 256
      %56 = vsyncadd [#allocation9], %s55
      %s57 = sshll.u32 [#allocation8], 4
      %s58 = int_to_ptr.vmem [resolvable:$true] %s57
      %63 = dma.hbm_to_vmem [thread:$0]  %s4, 256, %s58, [#allocation9], 128, 128, 8
    $region21: #{tpu_custom_call.1} parent=1 // pred_fallthru
      _
    // Predicated region
    $region22: #{tpu_custom_call.1} parent=1 // pred_check
      _
    $region23: #{tpu_custom_call.1} parent=1 // pred_check_branch
      %65 = sbr.rel (0) target = $region25
    $region24: #{tpu_custom_call.1} parent=1 // pred_region
      %66 = dma.done [#allocation3], 1024
    $region25: #{tpu_custom_call.1} parent=1 // pred_fallthru
      _
    // Predicated region
    $region26: #{tpu_custom_call.1} parent=1 // pred_check
      _
    $region27: #{tpu_custom_call.1} parent=1 // pred_check_branch
      %68 = sbr.rel (0) target = $region29
    $region28: #{tpu_custom_call.1} parent=1 // pred_region
      %69 = dma.done [#allocation6], 384
    $region29: #{tpu_custom_call.1} parent=1 // pred_fallthru
      _
    // Predicated region
    $region30: #{tpu_custom_call.1} parent=1 // pred_check
      _
    $region31: #{tpu_custom_call.1} parent=1 // pred_check_branch
      %71 = sbr.rel (0) target = $region33
    $region32: #{tpu_custom_call.1} parent=1 // pred_region
      %72 = dma.done [#allocation6], 384
    $region33: #{tpu_custom_call.1} parent=1 // pred_fallthru
      _
    // Predicated region
    $region34: #{tpu_custom_call.1} parent=1 // pred_check
      _
    $region35: #{tpu_custom_call.1} parent=1 // pred_check_branch
      %74 = sbr.rel (0) target = $region37
    $region36: #{tpu_custom_call.1} parent=1 // pred_region
      %75 = dma.done [#allocation9], 256
    $region37: #{tpu_custom_call.1} parent=1 // pred_fallthru
      _
    %v77 = vld [vmem:[#allocation2] sm:$0xff]
    %v78 = vld [vmem:[#allocation2 + $0x8] sm:$0xff]
    %v79 = vld [vmem:[#allocation2 + $0x10] sm:$0xff]
    %v80 = vld [vmem:[#allocation2 + $0x18] sm:$0xff]
    %v81 = vld [vmem:[#allocation2 + $0x20] sm:$0xff]
    %v82 = vld [vmem:[#allocation2 + $0x28] sm:$0xff]
    %v83 = vld [vmem:[#allocation2 + $0x30] sm:$0xff]
    %v84 = vld [vmem:[#allocation2 + $0x38] sm:$0xff]
    %v85 = vpack.c.bf16 %v78, %v77
    %v86 = vpack.c.bf16 %v80, %v79
    %v87 = vpack.c.bf16 %v82, %v81
    %v88 = vpack.c.bf16 %v84, %v83
    %v89 = vld [vmem:[#allocation5] sm:$0xf]
    %v90 = vld [vmem:[#allocation5 + $0x4] sm:$0xf]
    %v91 = vld [vmem:[#allocation5 + $0x8] sm:$0xf]
    %v92 = vld [vmem:[#allocation5 + $0xc] sm:$0xf]
    %v93 = vld [vmem:[#allocation5 + $0x10] sm:$0xf]
    %v94 = vld [vmem:[#allocation5 + $0x14] sm:$0x1]
    %v101 = vunpack.c.l.b16 %v89
    %v102 = vunpack.c.l.b16 %v90
    %v103 = vunpack.c.l.b16 %v91
    %v104 = vunpack.c.l.b16 %v92
    %v105 = vunpack.c.l.b16 %v93
    %v106 = vunpack.c.l.b16 %v94
    %v107 = vpack.c.b16 %v102, %v101
    %v108 = vpack.c.b16 %v104, %v103
    %v109 = vpack.c.b16 %v106, %v105
    %vm112 = vcmask 343040
    %v114 = vsel %vm112, %v85, 0
    %v117 = vsel %vm112, %v86, 0
    %v120 = vsel %vm112, %v87, 0
    %v123 = vsel %vm112, %v88, 0
    %vm125 = vcmask 1044480
    %v127 = vsel %vm125, %v109, 0
    %129 = vmatprep.subr.bf16.mxu0 0
    %130 = vmatpush1.bf16.msra.mxu0 0
    %131 = vmatprep.subr.bf16.mxu0 0
    %132 = vmatpush1.bf16.msra.mxu0 0
    %133 = vmatprep.subr.bf16.mxu0 0
    %134 = vmatpush1.bf16.msra.mxu0 0
    %135 = vmatprep.subr.bf16.mxu0 0
    %136 = vmatpush1.bf16.msra.mxu0 0
    %137 = vmatprep.subr.bf16.mxu0 0
    %138 = vmatpush1.bf16.msra.mxu0 0
    %139 = vmatprep.subr.bf16.mxu0 0
    %140 = vmatpush1.bf16.msra.mxu0 %v127
    %141 = vmatprep.subr.bf16.mxu0 0
    %142 = vmatpush1.bf16.msra.mxu0 %v108
    %143 = vmatprep.subr.bf16.mxu0 0
    %144 = vmatpush1.bf16.msra.mxu0 %v107
    %145 = vmatprep.subr.bf16.mxu0 0
    %146 = vmatpush2.bf16.msra.mxu0 0
    %147 = vmatprep.subr.bf16.mxu0 0
    %148 = vmatpush2.bf16.msra.mxu0 0
    %149 = vmatprep.subr.bf16.mxu0 0
    %150 = vmatpush2.bf16.msra.mxu0 0
    %151 = vmatprep.subr.bf16.mxu0 0
    %152 = vmatpush2.bf16.msra.mxu0 0
    %153 = vmatprep.subr.bf16.mxu0 0
    %154 = vmatpush2.bf16.msra.mxu0 0
    %155 = vmatprep.subr.bf16.mxu0 0
    %156 = vmatpush2.bf16.msra.mxu0 0
    %157 = vmatprep.subr.bf16.mxu0 0
    %158 = vmatpush2.bf16.msra.mxu0 0
    %159 = vmatprep.subr.bf16.mxu0 0
    %160 = vmatpush2.bf16.msra.mxu0 0
    %161 = vmatprep.mubr.bf16.mxu0 0
    %162 = vmatmul.mubr.bf16.gmra.mxu0 %v114
    %v163 = vpop.f32.mrf.mxu0
    %v164 = vadd.f32 0.0, %v163
    %v165 = vpop.f32.mrf.mxu0
    %v166 = vpop.f32.mrf.mxu0
    %v167 = vadd.f32 0.0, %v166
    %v168 = vpop.f32.mrf.mxu0
    %169 = vmatprep.mubr.bf16.mxu0 0
    %170 = vmatmul.mubr.bf16.gmra.mxu0 %v117
    %v171 = vpop.f32.mrf.mxu0
    %v172 = vadd.f32 0.0, %v171
    %v173 = vpop.f32.mrf.mxu0
    %v174 = vpop.f32.mrf.mxu0
    %v175 = vadd.f32 0.0, %v174
    %v176 = vpop.f32.mrf.mxu0
    %177 = vmatprep.mubr.bf16.mxu0 0
    %178 = vmatmul.mubr.bf16.gmra.mxu0 %v120
    %v179 = vpop.f32.mrf.mxu0
    %v180 = vadd.f32 0.0, %v179
    %v181 = vpop.f32.mrf.mxu0
    %v182 = vpop.f32.mrf.mxu0
    %v183 = vadd.f32 0.0, %v182
    %v184 = vpop.f32.mrf.mxu0
    %185 = vmatprep.mubr.bf16.mxu0 0
    %186 = vmatmul.mubr.bf16.gmra.mxu0 %v123
    %v187 = vpop.f32.mrf.mxu0
    %v188 = vadd.f32 0.0, %v187
    %v189 = vpop.f32.mrf.mxu0
    %v190 = vpop.f32.mrf.mxu0
    %v191 = vadd.f32 0.0, %v190
    %v192 = vpop.f32.mrf.mxu0
    %193 = vdwg.mxu0
    %v194 = vpack.c.bf16 %v167, %v164
    %v195 = vpack.c.bf16 %v175, %v172
    %v196 = vpack.c.bf16 %v183, %v180
    %v197 = vpack.c.bf16 %v191, %v188
    %v198 = vld [vmem:[#allocation8] sm:$0xff]
    %v199 = vld [vmem:[#allocation8 + $0x8] sm:$0xff]
    %201 = vrot.lane.b32.xlu0 %v194, 86
    %v202 = vpop.permute.xlu0 %201
    %v204 = vsel %vm112, %v202, 0
    %v207 = vsel %vm112, %v194, 0
    %209 = vmatprep.subr.bf16.mxu0 0
    %210 = vmatpush1.bf16.xpose.msra.mxu0 0
    %211 = vmatprep.subr.bf16.mxu0 0
    %212 = vmatpush1.bf16.xpose.msra.mxu0 0
    %213 = vmatprep.subr.bf16.mxu0 0
    %214 = vmatpush1.bf16.xpose.msra.mxu0 0
    %215 = vmatprep.subr.bf16.mxu0 0
    %216 = vmatpush1.bf16.xpose.msra.mxu0 0
    %217 = vmatprep.subr.bf16.mxu0 0
    %218 = vmatpush1.bf16.xpose.msra.mxu0 0
    %219 = vmatprep.subr.bf16.mxu0 0
    %220 = vmatpush1.bf16.xpose.msra.mxu0 0
    %221 = vmatprep.subr.bf16.mxu0 0
    %222 = vmatpush1.bf16.xpose.msra.mxu0 0
    %223 = vmatprep.subr.bf16.mxu0 0
    %224 = vmatpush1.bf16.xpose.msra.mxu0 %v207
    %225 = vmatprep.subr.bf16.mxu0 0
    %226 = vmatpush2.bf16.xpose.msra.mxu0 0
    %227 = vmatprep.subr.bf16.mxu0 0
    %228 = vmatpush2.bf16.xpose.msra.mxu0 0
    %229 = vmatprep.subr.bf16.mxu0 0
    %230 = vmatpush2.bf16.xpose.msra.mxu0 0
    %231 = vmatprep.subr.bf16.mxu0 0
    %232 = vmatpush2.bf16.xpose.msra.mxu0 0
    %233 = vmatprep.subr.bf16.mxu0 0
    %234 = vmatpush2.bf16.xpose.msra.mxu0 0
    %235 = vmatprep.subr.bf16.mxu0 0
    %236 = vmatpush2.bf16.xpose.msra.mxu0 0
    %237 = vmatprep.subr.bf16.mxu0 0
    %238 = vmatpush2.bf16.xpose.msra.mxu0 0
    %239 = vmatprep.subr.bf16.mxu0 0
    %240 = vmatpush2.bf16.xpose.msra.mxu0 0
    %241 = vmatprep.mubr.bf16.mxu0 0
    %242 = vmatmul.mubr.bf16.gmra.mxu0 %v204
    %v243 = vpop.f32.mrf.mxu0
    %v244 = vadd.f32 %v198, %v243
    %v245 = vpop.f32.mrf.mxu0
    %v246 = vpop.f32.mrf.mxu0
    %v247 = vadd.f32 %v199, %v246
    %v248 = vpop.f32.mrf.mxu0
    %249 = vdwg.mxu0
    %251 = vrot.lane.b32.xlu0 %v195, 86
    %v252 = vpop.permute.xlu0 %251
    %v254 = vsel %vm112, %v252, 0
    %v257 = vsel %vm112, %v195, 0
    %259 = vmatprep.subr.bf16.mxu0 0
    %260 = vmatpush1.bf16.xpose.msra.mxu0 0
    %261 = vmatprep.subr.bf16.mxu0 0
    %262 = vmatpush1.bf16.xpose.msra.mxu0 0
    %263 = vmatprep.subr.bf16.mxu0 0
    %264 = vmatpush1.bf16.xpose.msra.mxu0 0
    %265 = vmatprep.subr.bf16.mxu0 0
    %266 = vmatpush1.bf16.xpose.msra.mxu0 0
    %267 = vmatprep.subr.bf16.mxu0 0
    %268 = vmatpush1.bf16.xpose.msra.mxu0 0
    %269 = vmatprep.subr.bf16.mxu0 0
    %270 = vmatpush1.bf16.xpose.msra.mxu0 0
    %271 = vmatprep.subr.bf16.mxu0 0
    %272 = vmatpush1.bf16.xpose.msra.mxu0 0
    %273 = vmatprep.subr.bf16.mxu0 0
    %274 = vmatpush1.bf16.xpose.msra.mxu0 %v257
    %275 = vmatprep.subr.bf16.mxu0 0
    %276 = vmatpush2.bf16.xpose.msra.mxu0 0
    %277 = vmatprep.subr.bf16.mxu0 0
    %278 = vmatpush2.bf16.xpose.msra.mxu0 0
    %279 = vmatprep.subr.bf16.mxu0 0
    %280 = vmatpush2.bf16.xpose.msra.mxu0 0
    %281 = vmatprep.subr.bf16.mxu0 0
    %282 = vmatpush2.bf16.xpose.msra.mxu0 0
    %283 = vmatprep.subr.bf16.mxu0 0
    %284 = vmatpush2.bf16.xpose.msra.mxu0 0
    %285 = vmatprep.subr.bf16.mxu0 0
    %286 = vmatpush2.bf16.xpose.msra.mxu0 0
    %287 = vmatprep.subr.bf16.mxu0 0
    %288 = vmatpush2.bf16.xpose.msra.mxu0 0
    %289 = vmatprep.subr.bf16.mxu0 0
    %290 = vmatpush2.bf16.xpose.msra.mxu0 0
    %291 = vmatprep.mubr.bf16.mxu0 0
    %292 = vmatmul.mubr.bf16.gmra.mxu0 %v254
    %v293 = vpop.f32.mrf.mxu0
    %v294 = vadd.f32 %v198, %v293
    %v295 = vpop.f32.mrf.mxu0
    %v296 = vpop.f32.mrf.mxu0
    %v297 = vadd.f32 %v199, %v296
    %v298 = vpop.f32.mrf.mxu0
    %299 = vdwg.mxu0
    %301 = vrot.lane.b32.xlu0 %v196, 86
    %v302 = vpop.permute.xlu0 %301
    %v304 = vsel %vm112, %v302, 0
    %v307 = vsel %vm112, %v196, 0
    %309 = vmatprep.subr.bf16.mxu0 0
    %310 = vmatpush1.bf16.xpose.msra.mxu0 0
    %311 = vmatprep.subr.bf16.mxu0 0
    %312 = vmatpush1.bf16.xpose.msra.mxu0 0
    %313 = vmatprep.subr.bf16.mxu0 0
    %314 = vmatpush1.bf16.xpose.msra.mxu0 0
    %315 = vmatprep.subr.bf16.mxu0 0
    %316 = vmatpush1.bf16.xpose.msra.mxu0 0
    %317 = vmatprep.subr.bf16.mxu0 0
    %318 = vmatpush1.bf16.xpose.msra.mxu0 0
    %319 = vmatprep.subr.bf16.mxu0 0
    %320 = vmatpush1.bf16.xpose.msra.mxu0 0
    %321 = vmatprep.subr.bf16.mxu0 0
    %322 = vmatpush1.bf16.xpose.msra.mxu0 0
    %323 = vmatprep.subr.bf16.mxu0 0
    %324 = vmatpush1.bf16.xpose.msra.mxu0 %v307
    %325 = vmatprep.subr.bf16.mxu0 0
    %326 = vmatpush2.bf16.xpose.msra.mxu0 0
    %327 = vmatprep.subr.bf16.mxu0 0
    %328 = vmatpush2.bf16.xpose.msra.mxu0 0
    %329 = vmatprep.subr.bf16.mxu0 0
    %330 = vmatpush2.bf16.xpose.msra.mxu0 0
    %331 = vmatprep.subr.bf16.mxu0 0
    %332 = vmatpush2.bf16.xpose.msra.mxu0 0
    %333 = vmatprep.subr.bf16.mxu0 0
    %334 = vmatpush2.bf16.xpose.msra.mxu0 0
    %335 = vmatprep.subr.bf16.mxu0 0
    %336 = vmatpush2.bf16.xpose.msra.mxu0 0
    %337 = vmatprep.subr.bf16.mxu0 0
    %338 = vmatpush2.bf16.xpose.msra.mxu0 0
    %339 = vmatprep.subr.bf16.mxu0 0
    %340 = vmatpush2.bf16.xpose.msra.mxu0 0
    %341 = vmatprep.mubr.bf16.mxu0 0
    %342 = vmatmul.mubr.bf16.gmra.mxu0 %v304
    %v343 = vpop.f32.mrf.mxu0
    %v344 = vadd.f32 %v198, %v343
    %v345 = vpop.f32.mrf.mxu0
    %v346 = vpop.f32.mrf.mxu0
    %v347 = vadd.f32 %v199, %v346
    %v348 = vpop.f32.mrf.mxu0
    %349 = vdwg.mxu0
    %351 = vrot.lane.b32.xlu0 %v197, 86
    %v352 = vpop.permute.xlu0 %351
    %v354 = vsel %vm112, %v352, 0
    %v357 = vsel %vm112, %v197, 0
    %359 = vmatprep.subr.bf16.mxu0 0
    %360 = vmatpush1.bf16.xpose.msra.mxu0 0
    %361 = vmatprep.subr.bf16.mxu0 0
    %362 = vmatpush1.bf16.xpose.msra.mxu0 0
    %363 = vmatprep.subr.bf16.mxu0 0
    %364 = vmatpush1.bf16.xpose.msra.mxu0 0
    %365 = vmatprep.subr.bf16.mxu0 0
    %366 = vmatpush1.bf16.xpose.msra.mxu0 0
    %367 = vmatprep.subr.bf16.mxu0 0
    %368 = vmatpush1.bf16.xpose.msra.mxu0 0
    %369 = vmatprep.subr.bf16.mxu0 0
    %370 = vmatpush1.bf16.xpose.msra.mxu0 0
    %371 = vmatprep.subr.bf16.mxu0 0
    %372 = vmatpush1.bf16.xpose.msra.mxu0 0
    %373 = vmatprep.subr.bf16.mxu0 0
    %374 = vmatpush1.bf16.xpose.msra.mxu0 %v357
    %375 = vmatprep.subr.bf16.mxu0 0
    %376 = vmatpush2.bf16.xpose.msra.mxu0 0
    %377 = vmatprep.subr.bf16.mxu0 0
    %378 = vmatpush2.bf16.xpose.msra.mxu0 0
    %379 = vmatprep.subr.bf16.mxu0 0
    %380 = vmatpush2.bf16.xpose.msra.mxu0 0
    %381 = vmatprep.subr.bf16.mxu0 0
    %382 = vmatpush2.bf16.xpose.msra.mxu0 0
    %383 = vmatprep.subr.bf16.mxu0 0
    %384 = vmatpush2.bf16.xpose.msra.mxu0 0
    %385 = vmatprep.subr.bf16.mxu0 0
    %386 = vmatpush2.bf16.xpose.msra.mxu0 0
    %387 = vmatprep.subr.bf16.mxu0 0
    %388 = vmatpush2.bf16.xpose.msra.mxu0 0
    %389 = vmatprep.subr.bf16.mxu0 0
    %390 = vmatpush2.bf16.xpose.msra.mxu0 0
    %391 = vmatprep.mubr.bf16.mxu0 0
    %392 = vmatmul.mubr.bf16.gmra.mxu0 %v354
    %v393 = vpop.f32.mrf.mxu0
    %v394 = vadd.f32 %v198, %v393
    %v395 = vpop.f32.mrf.mxu0
    %v396 = vpop.f32.mrf.mxu0
    %v397 = vadd.f32 %v199, %v396
    %v398 = vpop.f32.mrf.mxu0
    %399 = vdwg.mxu0
    %vm400 = vcmask 130048
    %v401 = vsel %vm400, %v244, -inf
    %402 = vmax.xlane.f32.xlu0 %v401
    %v403 = vpop.xlane.xlu0 %402
    %v404 = vsel %vm400, %v247, -inf
    %405 = vmax.xlane.f32.xlu0 %v404
    %v406 = vpop.xlane.xlu0 %405
    %v407 = vsel %vm400, %v294, -inf
    %408 = vmax.xlane.f32.xlu0 %v407
    %v409 = vpop.xlane.xlu0 %408
    %v410 = vsel %vm400, %v297, -inf
    %411 = vmax.xlane.f32.xlu0 %v410
    %v412 = vpop.xlane.xlu0 %411
    %v413 = vsel %vm400, %v344, -inf
    %414 = vmax.xlane.f32.xlu0 %v413
    %v415 = vpop.xlane.xlu0 %414
    %v416 = vsel %vm400, %v347, -inf
    %417 = vmax.xlane.f32.xlu0 %v416
    %v418 = vpop.xlane.xlu0 %417
    %v419 = vsel %vm400, %v394, -inf
    %420 = vmax.xlane.f32.xlu0 %v419
    %v421 = vpop.xlane.xlu0 %420
    %v422 = vsel %vm400, %v397, -inf
    %423 = vmax.xlane.f32.xlu0 %v422
    %v424 = vpop.xlane.xlu0 %423
    %v425 = vsub.f32 %v244, %v403
    %v426 = vsub.f32 %v247, %v406
    %v427 = vsub.f32 %v294, %v409
    %v428 = vsub.f32 %v297, %v412
    %v429 = vsub.f32 %v344, %v415
    %v430 = vsub.f32 %v347, %v418
    %v431 = vsub.f32 %v394, %v421
    %v432 = vsub.f32 %v397, %v424
    %v433 = vmul.f32 %v425, 1.442695
    %v434 = vpow.pop %v433
    %v435 = vmul.f32 %v426, 1.442695
    %v436 = vpow.pop %v435
    %v437 = vmul.f32 %v427, 1.442695
    %v438 = vpow.pop %v437
    %v439 = vmul.f32 %v428, 1.442695
    %v440 = vpow.pop %v439
    %v441 = vmul.f32 %v429, 1.442695
    %v442 = vpow.pop %v441
    %v443 = vmul.f32 %v430, 1.442695
    %v444 = vpow.pop %v443
    %v445 = vmul.f32 %v431, 1.442695
    %v446 = vpow.pop %v445
    %v447 = vmul.f32 %v432, 1.442695
    %v448 = vpow.pop %v447
    %v449 = vsel %vm400, %v434, 0.0
    %450 = vadd.xlane.f32.xlu0 %v449
    %v451 = vpop.xlane.xlu0 %450
    %v452 = vsel %vm400, %v436, 0.0
    %453 = vadd.xlane.f32.xlu0 %v452
    %v454 = vpop.xlane.xlu0 %453
    %v455 = vsel %vm400, %v438, 0.0
    %456 = vadd.xlane.f32.xlu0 %v455
    %v457 = vpop.xlane.xlu0 %456
    %v458 = vsel %vm400, %v440, 0.0
    %459 = vadd.xlane.f32.xlu0 %v458
    %v460 = vpop.xlane.xlu0 %459
    %v461 = vsel %vm400, %v442, 0.0
    %462 = vadd.xlane.f32.xlu0 %v461
    %v463 = vpop.xlane.xlu0 %462
    %v464 = vsel %vm400, %v444, 0.0
    %465 = vadd.xlane.f32.xlu0 %v464
    %v466 = vpop.xlane.xlu0 %465
    %v467 = vsel %vm400, %v446, 0.0
    %468 = vadd.xlane.f32.xlu0 %v467
    %v469 = vpop.xlane.xlu0 %468
    %v470 = vsel %vm400, %v448, 0.0
    %471 = vadd.xlane.f32.xlu0 %v470
    %v472 = vpop.xlane.xlu0 %471
    %v473 = vpack.c.bf16 %v436, %v434
    %v474 = vpack.c.bf16 %v440, %v438
    %v475 = vpack.c.bf16 %v444, %v442
    %v476 = vpack.c.bf16 %v448, %v446
    %477 = vrot.lane.b32.xlu0 %v194, 44
    %v478 = vpop.permute.xlu0 %477
    %v481 = vsel %vm400, %v473, 0
    %483 = vmatprep.subr.bf16.mxu0 0
    %484 = vmatpush1.bf16.msra.mxu0 0
    %485 = vmatprep.subr.bf16.mxu0 0
    %486 = vmatpush1.bf16.msra.mxu0 0
    %487 = vmatprep.subr.bf16.mxu0 0
    %488 = vmatpush1.bf16.msra.mxu0 0
    %489 = vmatprep.subr.bf16.mxu0 0
    %490 = vmatpush1.bf16.msra.mxu0 0
    %491 = vmatprep.subr.bf16.mxu0 0
    %492 = vmatpush1.bf16.msra.mxu0 0
    %493 = vmatprep.subr.bf16.mxu0 0
    %494 = vmatpush1.bf16.msra.mxu0 0
    %495 = vmatprep.subr.bf16.mxu0 0
    %496 = vmatpush1.bf16.msra.mxu0 0
    %497 = vmatprep.subr.bf16.mxu0 0
    %498 = vmatpush1.bf16.msra.mxu0 %v478
    %499 = vmatprep.subr.bf16.mxu0 0
    %500 = vmatpush2.bf16.msra.mxu0 0
    %501 = vmatprep.subr.bf16.mxu0 0
    %502 = vmatpush2.bf16.msra.mxu0 0
    %503 = vmatprep.subr.bf16.mxu0 0
    %504 = vmatpush2.bf16.msra.mxu0 0
    %505 = vmatprep.subr.bf16.mxu0 0
    %506 = vmatpush2.bf16.msra.mxu0 0
    %507 = vmatprep.subr.bf16.mxu0 0
    %508 = vmatpush2.bf16.msra.mxu0 0
    %509 = vmatprep.subr.bf16.mxu0 0
    %510 = vmatpush2.bf16.msra.mxu0 0
    %511 = vmatprep.subr.bf16.mxu0 0
    %512 = vmatpush2.bf16.msra.mxu0 0
    %513 = vmatprep.subr.bf16.mxu0 0
    %514 = vmatpush2.bf16.msra.mxu0 0
    %515 = vmatprep.mubr.bf16.mxu0 0
    %516 = vmatmul.mubr.bf16.gmra.mxu0 %v481
    %v517 = vpop.f32.mrf.mxu0
    %v518 = vadd.f32 0.0, %v517
    %v519 = vpop.f32.mrf.mxu0
    %v520 = vpop.f32.mrf.mxu0
    %v521 = vadd.f32 0.0, %v520
    %v522 = vpop.f32.mrf.mxu0
    %523 = vdwg.mxu0
    %524 = vrot.lane.b32.xlu0 %v195, 44
    %v525 = vpop.permute.xlu0 %524
    %v528 = vsel %vm400, %v474, 0
    %530 = vmatprep.subr.bf16.mxu0 0
    %531 = vmatpush1.bf16.msra.mxu0 0
    %532 = vmatprep.subr.bf16.mxu0 0
    %533 = vmatpush1.bf16.msra.mxu0 0
    %534 = vmatprep.subr.bf16.mxu0 0
    %535 = vmatpush1.bf16.msra.mxu0 0
    %536 = vmatprep.subr.bf16.mxu0 0
    %537 = vmatpush1.bf16.msra.mxu0 0
    %538 = vmatprep.subr.bf16.mxu0 0
    %539 = vmatpush1.bf16.msra.mxu0 0
    %540 = vmatprep.subr.bf16.mxu0 0
    %541 = vmatpush1.bf16.msra.mxu0 0
    %542 = vmatprep.subr.bf16.mxu0 0
    %543 = vmatpush1.bf16.msra.mxu0 0
    %544 = vmatprep.subr.bf16.mxu0 0
    %545 = vmatpush1.bf16.msra.mxu0 %v525
    %546 = vmatprep.subr.bf16.mxu0 0
    %547 = vmatpush2.bf16.msra.mxu0 0
    %548 = vmatprep.subr.bf16.mxu0 0
    %549 = vmatpush2.bf16.msra.mxu0 0
    %550 = vmatprep.subr.bf16.mxu0 0
    %551 = vmatpush2.bf16.msra.mxu0 0
    %552 = vmatprep.subr.bf16.mxu0 0
    %553 = vmatpush2.bf16.msra.mxu0 0
    %554 = vmatprep.subr.bf16.mxu0 0
    %555 = vmatpush2.bf16.msra.mxu0 0
    %556 = vmatprep.subr.bf16.mxu0 0
    %557 = vmatpush2.bf16.msra.mxu0 0
    %558 = vmatprep.subr.bf16.mxu0 0
    %559 = vmatpush2.bf16.msra.mxu0 0
    %560 = vmatprep.subr.bf16.mxu0 0
    %561 = vmatpush2.bf16.msra.mxu0 0
    %562 = vmatprep.mubr.bf16.mxu0 0
    %563 = vmatmul.mubr.bf16.gmra.mxu0 %v528
    %v564 = vpop.f32.mrf.mxu0
    %v565 = vadd.f32 0.0, %v564
    %v566 = vpop.f32.mrf.mxu0
    %v567 = vpop.f32.mrf.mxu0
    %v568 = vadd.f32 0.0, %v567
    %v569 = vpop.f32.mrf.mxu0
    %570 = vdwg.mxu0
    %571 = vrot.lane.b32.xlu0 %v196, 44
    %v572 = vpop.permute.xlu0 %571
    %v575 = vsel %vm400, %v475, 0
    %577 = vmatprep.subr.bf16.mxu0 0
    %578 = vmatpush1.bf16.msra.mxu0 0
    %579 = vmatprep.subr.bf16.mxu0 0
    %580 = vmatpush1.bf16.msra.mxu0 0
    %581 = vmatprep.subr.bf16.mxu0 0
    %582 = vmatpush1.bf16.msra.mxu0 0
    %583 = vmatprep.subr.bf16.mxu0 0
    %584 = vmatpush1.bf16.msra.mxu0 0
    %585 = vmatprep.subr.bf16.mxu0 0
    %586 = vmatpush1.bf16.msra.mxu0 0
    %587 = vmatprep.subr.bf16.mxu0 0
    %588 = vmatpush1.bf16.msra.mxu0 0
    %589 = vmatprep.subr.bf16.mxu0 0
    %590 = vmatpush1.bf16.msra.mxu0 0
    %591 = vmatprep.subr.bf16.mxu0 0
    %592 = vmatpush1.bf16.msra.mxu0 %v572
    %593 = vmatprep.subr.bf16.mxu0 0
    %594 = vmatpush2.bf16.msra.mxu0 0
    %595 = vmatprep.subr.bf16.mxu0 0
    %596 = vmatpush2.bf16.msra.mxu0 0
    %597 = vmatprep.subr.bf16.mxu0 0
    %598 = vmatpush2.bf16.msra.mxu0 0
    %599 = vmatprep.subr.bf16.mxu0 0
    %600 = vmatpush2.bf16.msra.mxu0 0
    %601 = vmatprep.subr.bf16.mxu0 0
    %602 = vmatpush2.bf16.msra.mxu0 0
    %603 = vmatprep.subr.bf16.mxu0 0
    %604 = vmatpush2.bf16.msra.mxu0 0
    %605 = vmatprep.subr.bf16.mxu0 0
    %606 = vmatpush2.bf16.msra.mxu0 0
    %607 = vmatprep.subr.bf16.mxu0 0
    %608 = vmatpush2.bf16.msra.mxu0 0
    %609 = vmatprep.mubr.bf16.mxu0 0
    %610 = vmatmul.mubr.bf16.gmra.mxu0 %v575
    %v611 = vpop.f32.mrf.mxu0
    %v612 = vadd.f32 0.0, %v611
    %v613 = vpop.f32.mrf.mxu0
    %v614 = vpop.f32.mrf.mxu0
    %v615 = vadd.f32 0.0, %v614
    %v616 = vpop.f32.mrf.mxu0
    %617 = vdwg.mxu0
    %618 = vrot.lane.b32.xlu0 %v197, 44
    %v619 = vpop.permute.xlu0 %618
    %v622 = vsel %vm400, %v476, 0
    %624 = vmatprep.subr.bf16.mxu0 0
    %625 = vmatpush1.bf16.msra.mxu0 0
    %626 = vmatprep.subr.bf16.mxu0 0
    %627 = vmatpush1.bf16.msra.mxu0 0
    %628 = vmatprep.subr.bf16.mxu0 0
    %629 = vmatpush1.bf16.msra.mxu0 0
    %630 = vmatprep.subr.bf16.mxu0 0
    %631 = vmatpush1.bf16.msra.mxu0 0
    %632 = vmatprep.subr.bf16.mxu0 0
    %633 = vmatpush1.bf16.msra.mxu0 0
    %634 = vmatprep.subr.bf16.mxu0 0
    %635 = vmatpush1.bf16.msra.mxu0 0
    %636 = vmatprep.subr.bf16.mxu0 0
    %637 = vmatpush1.bf16.msra.mxu0 0
    %638 = vmatprep.subr.bf16.mxu0 0
    %639 = vmatpush1.bf16.msra.mxu0 %v619
    %640 = vmatprep.subr.bf16.mxu0 0
    %641 = vmatpush2.bf16.msra.mxu0 0
    %642 = vmatprep.subr.bf16.mxu0 0
    %643 = vmatpush2.bf16.msra.mxu0 0
    %644 = vmatprep.subr.bf16.mxu0 0
    %645 = vmatpush2.bf16.msra.mxu0 0
    %646 = vmatprep.subr.bf16.mxu0 0
    %647 = vmatpush2.bf16.msra.mxu0 0
    %648 = vmatprep.subr.bf16.mxu0 0
    %649 = vmatpush2.bf16.msra.mxu0 0
    %650 = vmatprep.subr.bf16.mxu0 0
    %651 = vmatpush2.bf16.msra.mxu0 0
    %652 = vmatprep.subr.bf16.mxu0 0
    %653 = vmatpush2.bf16.msra.mxu0 0
    %654 = vmatprep.subr.bf16.mxu0 0
    %655 = vmatpush2.bf16.msra.mxu0 0
    %656 = vmatprep.mubr.bf16.mxu0 0
    %657 = vmatmul.mubr.bf16.gmra.mxu0 %v622
    %v658 = vpop.f32.mrf.mxu0
    %v659 = vadd.f32 0.0, %v658
    %v660 = vpop.f32.mrf.mxu0
    %v661 = vpop.f32.mrf.mxu0
    %v662 = vadd.f32 0.0, %v661
    %v663 = vpop.f32.mrf.mxu0
    %664 = vdwg.mxu0
    %v665 = vrcp.pop %v451
    %v666 = vrcp.pop %v454
    %v667 = vrcp.pop %v457
    %v668 = vrcp.pop %v460
    %v669 = vrcp.pop %v463
    %v670 = vrcp.pop %v466
    %v671 = vrcp.pop %v469
    %v672 = vrcp.pop %v472
    %v673 = vmul.f32 %v518, %v665
    %v674 = vmul.f32 %v521, %v666
    %v675 = vmul.f32 %v565, %v667
    %v676 = vmul.f32 %v568, %v668
    %v677 = vmul.f32 %v612, %v669
    %v678 = vmul.f32 %v615, %v670
    %v679 = vmul.f32 %v659, %v671
    %v680 = vmul.f32 %v662, %v672
    %v681 = vpack.c.bf16 %v674, %v673
    %v682 = vpack.c.bf16 %v676, %v675
    %v683 = vpack.c.bf16 %v678, %v677
    %v684 = vpack.c.bf16 %v680, %v679
    %v685 = vld [vmem:[#allocation7] sm:$0xf]
    %v686 = vld [vmem:[#allocation7 + $0x4] sm:$0xf]
    %v687 = vld [vmem:[#allocation7 + $0x8] sm:$0xf]
    %v688 = vld [vmem:[#allocation7 + $0xc] sm:$0xf]
    %v689 = vld [vmem:[#allocation7 + $0x10] sm:$0xf]
    %v690 = vld [vmem:[#allocation7 + $0x14] sm:$0x1]
    %v691 = vld [vmem:[%s3] sm:$0x1]
    %v693 = vlaneseq
    %v694 = vshrl.u32 %v693, 7
    %v695 = vsub.s32 0, %v694
    %v696 = vrot.slane %v691, %v695
    %v704 = vunpack.c.l.b16 %v685
    %v705 = vunpack.c.l.b16 %v686
    %v706 = vunpack.c.l.b16 %v687
    %v707 = vunpack.c.l.b16 %v688
    %v708 = vunpack.c.l.b16 %v689
    %v709 = vunpack.c.l.b16 %v690
    %v710 = vpack.c.b16 %v705, %v704
    %v711 = vpack.c.b16 %v707, %v706
    %v712 = vpack.c.b16 %v709, %v708
    %v716 = vsel %vm112, %v681, 0
    %v719 = vsel %vm112, %v682, 0
    %v722 = vsel %vm112, %v683, 0
    %v725 = vsel %vm112, %v684, 0
    %v728 = vsel %vm125, %v712, 0
    %730 = vmatprep.subr.bf16.mxu0 0
    %731 = vmatpush1.bf16.msra.mxu0 0
    %732 = vmatprep.subr.bf16.mxu0 0
    %733 = vmatpush1.bf16.msra.mxu0 0
    %734 = vmatprep.subr.bf16.mxu0 0
    %735 = vmatpush1.bf16.msra.mxu0 0
    %736 = vmatprep.subr.bf16.mxu0 0
    %737 = vmatpush1.bf16.msra.mxu0 0
    %738 = vmatprep.subr.bf16.mxu0 0
    %739 = vmatpush1.bf16.msra.mxu0 0
    %740 = vmatprep.subr.bf16.mxu0 0
    %741 = vmatpush1.bf16.msra.mxu0 %v728
    %742 = vmatprep.subr.bf16.mxu0 0
    %743 = vmatpush1.bf16.msra.mxu0 %v711
    %744 = vmatprep.subr.bf16.mxu0 0
    %745 = vmatpush1.bf16.msra.mxu0 %v710
    %746 = vmatprep.subr.bf16.mxu0 0
    %747 = vmatpush2.bf16.msra.mxu0 0
    %748 = vmatprep.subr.bf16.mxu0 0
    %749 = vmatpush2.bf16.msra.mxu0 0
    %750 = vmatprep.subr.bf16.mxu0 0
    %751 = vmatpush2.bf16.msra.mxu0 0
    %752 = vmatprep.subr.bf16.mxu0 0
    %753 = vmatpush2.bf16.msra.mxu0 0
    %754 = vmatprep.subr.bf16.mxu0 0
    %755 = vmatpush2.bf16.msra.mxu0 0
    %756 = vmatprep.subr.bf16.mxu0 0
    %757 = vmatpush2.bf16.msra.mxu0 0
    %758 = vmatprep.subr.bf16.mxu0 0
    %759 = vmatpush2.bf16.msra.mxu0 0
    %760 = vmatprep.subr.bf16.mxu0 0
    %761 = vmatpush2.bf16.msra.mxu0 0
    %762 = vmatprep.mubr.bf16.mxu0 0
    %763 = vmatmul.mubr.bf16.gmra.mxu0 %v716
    %v764 = vpop.f32.mrf.mxu0
    %v765 = vadd.f32 %v696, %v764
    %v766 = vpop.f32.mrf.mxu0
    %v767 = vpop.f32.mrf.mxu0
    %v768 = vadd.f32 %v696, %v767
    %v769 = vpop.f32.mrf.mxu0
    %770 = vmatprep.mubr.bf16.mxu0 0
    %771 = vmatmul.mubr.bf16.gmra.mxu0 %v719
    %v772 = vpop.f32.mrf.mxu0
    %v773 = vadd.f32 %v696, %v772
    %v774 = vpop.f32.mrf.mxu0
    %v775 = vpop.f32.mrf.mxu0
    %v776 = vadd.f32 %v696, %v775
    %v777 = vpop.f32.mrf.mxu0
    %778 = vmatprep.mubr.bf16.mxu0 0
    %779 = vmatmul.mubr.bf16.gmra.mxu0 %v722
    %v780 = vpop.f32.mrf.mxu0
    %v781 = vadd.f32 %v696, %v780
    %v782 = vpop.f32.mrf.mxu0
    %v783 = vpop.f32.mrf.mxu0
    %v784 = vadd.f32 %v696, %v783
    %v785 = vpop.f32.mrf.mxu0
    %786 = vmatprep.mubr.bf16.mxu0 0
    %787 = vmatmul.mubr.bf16.gmra.mxu0 %v725
    %v788 = vpop.f32.mrf.mxu0
    %v789 = vadd.f32 %v696, %v788
    %v790 = vpop.f32.mrf.mxu0
    %v791 = vpop.f32.mrf.mxu0
    %v792 = vadd.f32 %v696, %v791
    %v793 = vpop.f32.mrf.mxu0
    %794 = vdwg.mxu0
    %795 = vst.msk [vmem:[#allocation10] sm:$0xff] %vm112, %v765
    %796 = vst.msk [vmem:[#allocation10 + $0x8] sm:$0xff] %vm112, %v768
    %797 = vst.msk [vmem:[#allocation10 + $0x10] sm:$0xff] %vm112, %v773
    %798 = vst.msk [vmem:[#allocation10 + $0x18] sm:$0xff] %vm112, %v776
    %799 = vst.msk [vmem:[#allocation10 + $0x20] sm:$0xff] %vm112, %v781
    %800 = vst.msk [vmem:[#allocation10 + $0x28] sm:$0xff] %vm112, %v784
    %801 = vst.msk [vmem:[#allocation10 + $0x30] sm:$0xff] %vm112, %v789
    %802 = vst.msk [vmem:[#allocation10 + $0x38] sm:$0xff] %vm112, %v792
    // Predicated region
    $region38: #{tpu_custom_call.1} parent=1 // pred_check
      _
    $region39: #{tpu_custom_call.1} parent=1 // pred_check_branch
      %804 = sbr.rel (0) target = $region41
    $region40: #{tpu_custom_call.1} parent=1 // pred_region
      %s806 = ssub.s32 1024, 1024
      %807 = vsyncadd [#allocation4], %s806
      %s808 = sshll.u32 [#allocation10], 4
      %s809 = int_to_ptr.vmem [resolvable:$true] %s808
      %814 = dma.vmem_to_hbm [thread:$0]  %s809, 1024, %s5, [#allocation4], 128, 128, 8
    $region41: #{tpu_custom_call.1} parent=1 // pred_fallthru
      _
    // Predicated region
    $region42: #{tpu_custom_call.1} parent=1 // pred_check
      _
    $region43: #{tpu_custom_call.1} parent=1 // pred_check_branch
      %816 = sbr.rel (0) target = $region45
    $region44: #{tpu_custom_call.1} parent=1 // pred_region
      %817 = dma.done [#allocation4], 1024
    $region45: #{tpu_custom_call.1} parent=1 // pred_fallthru
      _
    %818 = vsyncpa [#allocation3], 1
    %819 = vsyncpa [#allocation6], 1
    %820 = vsyncpa [#allocation9], 1
    %821 = vsyncpa [#allocation4], 1

</llo_original>
